<compile_context>
chip_gen: v7x
topology: tpu7x:2x2x1
jax: 0.10.0
libtpu: 0.0.40
codegen_flags: <defaults>
</compile_context>

<pallas_src>
import functools

import numpy as np
import jax
import jax.numpy as jnp
from jax import lax
from jax.experimental import pallas as pl
from jax.experimental.pallas import tpu as pltpu


# --------------------------------------------------------------------------
# Kernel bodies
# --------------------------------------------------------------------------
def _tile_partial_sums(x_ref, t_ref, pw_ref, *, total_rows, tile_n):
    """Three masked per-tile partial sums packed into an (8,128) f32 block."""
    i = pl.program_id(0)

    x = x_ref[...].astype(jnp.float32)   # (tile_n, C) logits, upcast per tile
    t = t_ref[...]                       # (tile_n, 1) int32 targets
    pw = pw_ref[...]                     # (tile_n, 1) f32 w[target] (0 if ignored)
    c = x.shape[-1]

    # Numerically-stable logsumexp along the class (lane) axis.
    m = jnp.max(x, axis=-1, keepdims=True)
    lse = jnp.log(jnp.sum(jnp.exp(x - m), axis=-1, keepdims=True)) + m

    # Smoothing term per row, without materializing log-probs:
    #   -sum_c log_softmax(x) = C * lse - sum_c x
    neg_lp_sum = c * lse - jnp.sum(x, axis=-1, keepdims=True)

    # Target-logit pick via compare + masked lane reduce (no gather). Rows with
    # target outside [0, C) (ignore_index) match nothing -> picked_x = 0, and
    # their pw is already 0, so they contribute nothing to the NLL terms.
    cls_ids = lax.broadcasted_iota(jnp.int32, (tile_n, c), 1)
    picked_x = jnp.sum(jnp.where(cls_ids == t, x, 0.0), axis=-1, keepdims=True)
    wnll = pw * (lse - picked_x)         # w[t_i] * (-log_softmax(x)[i, t_i])

    # Mask rows past the true batch size (padding of the last, partial tile).
    # All masking is via selects, so garbage (NaN/Inf) in padded rows cannot
    # propagate into the sums.
    row_ids = i * tile_n + lax.broadcasted_iota(jnp.int32, (tile_n, 1), 0)
    valid = row_ids < total_rows
    s_smooth = jnp.sum(jnp.where(valid, neg_lp_sum, 0.0))
    s_wnll = jnp.sum(jnp.where(valid, wnll, 0.0))
    s_w = jnp.sum(jnp.where(valid, pw, 0.0))

    # Pack the three scalars into lanes 0..2 of sublane 0 of an (8,128) block
    # (lane-dense, unmasked store).
    sub = lax.broadcasted_iota(jnp.int32, (8, 128), 0)
    lane = lax.broadcasted_iota(jnp.int32, (8, 128), 1)
    row0 = sub == 0
    return jnp.where(row0 & (lane == 0), s_smooth,
           jnp.where(row0 & (lane == 1), s_wnll,
           jnp.where(row0 & (lane == 2), s_w, 0.0)))


def _ls_kernel_partials(x_ref, t_ref, pw_ref, out_ref, *, total_rows, tile_n):
    # Per-tile partial slab (batch axis "parallel" -> megacore-friendly).
    out_ref[0] = _tile_partial_sums(x_ref, t_ref, pw_ref,
                                    total_rows=total_rows, tile_n=tile_n)


def _ls_kernel_accumulate(x_ref, t_ref, pw_ref, out_ref, *, total_rows, tile_n):
    # Resident VMEM accumulator (batch axis "arbitrary", single TensorCore).
    blk = _tile_partial_sums(x_ref, t_ref, pw_ref,
                             total_rows=total_rows, tile_n=tile_n)

    @pl.when(pl.program_id(0) == 0)
    def _():
        out_ref[...] = jnp.zeros_like(out_ref)

    out_ref[...] += blk


# --------------------------------------------------------------------------
# Planning helpers
# --------------------------------------------------------------------------
def _vmem_capacity_bytes():
    try:
        info = pltpu.get_tpu_info()
        cap = getattr(info, "vmem_capacity_bytes", None)
        if cap:
            return int(cap)
    except Exception:
        pass
    return 64 * 1024 * 1024   # conservative per-TensorCore default (v7x)


def _default_output_mode():
    # Single-TC chips (v5e/v6e): resident accumulator output (no per-tile HBM
    # writeback / JAX-side reduce). Anything else (v7x and other megacore
    # parts, or unknown): per-tile partial slabs + "parallel" grid axis so the
    # TensorCores can split the batch grid (safe everywhere).
    try:
        kind = jax.devices()[0].device_kind.lower()
    except Exception:
        return "partials"
    single_tc = ("v5e", "v5 lite", "v5lite", "v6e", "v6 lite", "v6lite")
    return "accumulate" if any(m in kind for m in single_tc) else "partials"


def _plan_tiling(n, c, dtype_bytes, tile_n):
    row_mult = 16 if dtype_bytes <= 2 else 8     # sublane packing multiple
    padded_n = -(-n // row_mult) * row_mult
    vmem_cap = _vmem_capacity_bytes()

    # Per-batch-row VMEM bytes of one pipeline step:
    #   * logits block in its HBM dtype, double-buffered,
    #   * targets + picked_w (tile_n, 1) blocks: lane-padded to 128 lanes,
    #     4-byte elems, double-buffered each,
    #   * ~4 tile-sized f32 in-kernel temporaries (upcast x, exp(x-m),
    #     class iota, masked selects).
    per_row_bytes = 2 * c * dtype_bytes + 2 * 2 * 128 * 4 + 4 * c * 4

    if tile_n is None:
        budget = min(48 << 20, vmem_cap // 2)
        cap_rows = max(row_mult,
                       (budget // per_row_bytes) // row_mult * row_mult)
        tile_n = int(min(cap_rows, padded_n))

    est_bytes = per_row_bytes * tile_n + (2 << 20)   # + output block / misc slack
    if est_bytes > (vmem_cap * 9) // 10:
        # TODO(synk): class-tiled online-LSE grid for LM-vocab-scale C.
        raise NotImplementedError(
            f"per-step VMEM footprint ~{est_bytes >> 20} MiB exceeds VMEM "
            f"capacity {vmem_cap >> 20} MiB; a class-tiled online-LSE kernel "
            "is required for this class count.")
    vmem_limit = int(min((vmem_cap * 7) // 8,
                         max(32 << 20, (est_bytes * 5) // 4)))
    return tile_n, vmem_limit


# --------------------------------------------------------------------------
# Public wrapper
# --------------------------------------------------------------------------
def label_smoothing_cross_entropy(outputs, targets, weight,
                                  smoothing_value=0.1, reduction="mean",
                                  ignore_index=-100, tile_n=None,
                                  output_mode=None):
    """Pallas implementation of LabelSmoothingCrossEntropyLoss.forward."""
    n, c = outputs.shape
    dtype_bytes = jnp.dtype(outputs.dtype).itemsize
    tile_n, vmem_limit = _plan_tiling(n, c, dtype_bytes, tile_n)
    num_tiles = int(pl.cdiv(n, tile_n))
    if output_mode is None:
        output_mode = _default_output_mode()

    targets_col = targets.astype(jnp.int32).reshape(n, 1)
    # Per-row class-weight gather done once in the wrapper (N elements); rows
    # with ignore_index get weight 0 so they drop out of both NLL sums.
    valid_t = targets != ignore_index
    safe_t = jnp.where(valid_t, targets, 0).astype(jnp.int32)
    picked_w_col = jnp.where(valid_t, weight.astype(jnp.float32)[safe_t],
                             0.0).reshape(n, 1)

    in_specs = [
        pl.BlockSpec((tile_n, c), lambda i: (i, 0)),   # logits tile (HBM dtype)
        pl.BlockSpec((tile_n, 1), lambda i: (i, 0)),   # targets tile
        pl.BlockSpec((tile_n, 1), lambda i: (i, 0)),   # w[target] tile
    ]
    cost = pl.CostEstimate(
        flops=8 * n * c,
        transcendentals=n * c,
        bytes_accessed=n * c * dtype_bytes + 2 * n * 4
        + num_tiles * 8 * 128 * 4)

    if output_mode == "partials":
        kernel = functools.partial(_ls_kernel_partials,
                                   total_rows=n, tile_n=tile_n)
        partials = pl.pallas_call(
            kernel,
            out_shape=jax.ShapeDtypeStruct((num_tiles, 8, 128), jnp.float32),
            grid_spec=pltpu.PrefetchScalarGridSpec(
                num_scalar_prefetch=0,
                grid=(num_tiles,),
                in_specs=in_specs,
                out_specs=pl.BlockSpec((1, 8, 128), lambda i: (i, 0, 0)),
            ),
            compiler_params=pltpu.CompilerParams(
                dimension_semantics=("parallel",),
                vmem_limit_bytes=vmem_limit),
            cost_estimate=cost,
        )(outputs, targets_col, picked_w_col)
        sum_neg_lp = jnp.sum(partials[:, 0, 0])   # smoothing-loss numerator
        sum_wnll = jnp.sum(partials[:, 0, 1])     # weighted NLL numerator
        sum_w = jnp.sum(partials[:, 0, 2])        # NLL weight denominator
    elif output_mode == "accumulate":
        kernel = functools.partial(_ls_kernel_accumulate,
                                   total_rows=n, tile_n=tile_n)
        sums = pl.pallas_call(
            kernel,
            out_shape=jax.ShapeDtypeStruct((8, 128), jnp.float32),
            grid_spec=pltpu.PrefetchScalarGridSpec(
                num_scalar_prefetch=0,
                grid=(num_tiles,),
                in_specs=in_specs,
                out_specs=pl.BlockSpec((8, 128), lambda i: (0, 0)),
            ),
            compiler_params=pltpu.CompilerParams(
                dimension_semantics=("arbitrary",),
                vmem_limit_bytes=vmem_limit),
            cost_estimate=cost,
        )(outputs, targets_col, picked_w_col)
        sum_neg_lp = sums[0, 0]
        sum_wnll = sums[0, 1]
        sum_w = sums[0, 2]
    else:
        raise ValueError(f"unknown output_mode: {output_mode!r}")

    if reduction == "mean":
        smooth_loss = sum_neg_lp / n
        # NOTE: if every target is ignore_index, sum_w == 0 and this is NaN,
        # matching torch.nn.functional.nll_loss behaviour.
        nll = sum_wnll / sum_w
    elif reduction == "sum":
        smooth_loss = sum_neg_lp
        nll = sum_wnll
    else:
        # TODO(synk): reduction='none' returns per-element tensors; only
        # 'mean'/'sum' are implemented here.
        raise NotImplementedError("reduction must be 'mean' or 'sum'")

    s = smoothing_value
    return (1.0 - s) * nll + s * (smooth_loss / c)


# --------------------------------------------------------------------------
# Pure-JAX reference + self-test
# --------------------------------------------------------------------------
def _reference(outputs, targets, weight, smoothing_value=0.1, ignore_index=-100):
    """Pure-JAX reference matching the PyTorch module (reduction='mean')."""
    n, c = outputs.shape
    lp = jax.nn.log_softmax(outputs.astype(jnp.float32), axis=1)
    smooth_loss = jnp.mean(-jnp.sum(lp, axis=-1))      # all rows (matches module)
    valid = targets != ignore_index
    safe_t = jnp.where(valid, targets, 0)
    picked_lp = jnp.take_along_axis(lp, safe_t[:, None], axis=1)[:, 0]
    picked_w = jnp.where(valid, weight.astype(jnp.float32)[safe_t], 0.0)
    nll = jnp.sum(-picked_lp * picked_w) / jnp.sum(picked_w)
    s = smoothing_value
    return (1.0 - s) * nll + s * (smooth_loss / c)


if __name__ == "__main__":
    key = jax.random.PRNGKey(0)
    k_logits, k_targets = jax.random.split(key)

    # Small shapes: batch along sublanes, classes along the 128-lane axis.
    N, C = 20, 128
    outputs = jax.random.normal(k_logits, (N, C), dtype=jnp.float32)
    targets = jax.random.randint(k_targets, (N,), 0, C, dtype=jnp.int32)
    targets = targets.at[3].set(-100)  # exercise ignore_index path
    weight = jnp.linspace(0.5, 1.5, C, dtype=jnp.float32)
    ref = _reference(outputs, targets, weight, smoothing_value=0.1)

    # tile_n=8 forces a multi-tile grid (3 tiles) with a masked partial last
    # tile; test both output modes so either chip generation's path is covered.
    for mode in ("partials", "accumulate"):
        loss = label_smoothing_cross_entropy(outputs, targets, weight,
                                             smoothing_value=0.1,
                                             reduction="mean",
                                             tile_n=8,
                                             output_mode=mode)
        loss = jax.block_until_ready(loss)
        assert np.allclose(np.asarray(loss), np.asarray(ref),
                           rtol=1e-4, atol=1e-5), (mode, loss, ref)

    # Auto tile_n derivation + auto output-mode selection path.
    k3, k4 = jax.random.split(k_logits)
    N2, C2 = 300, 256
    outputs2 = jax.random.normal(k3, (N2, C2), dtype=jnp.float32)
    targets2 = jax.random.randint(k4, (N2,), 0, C2, dtype=jnp.int32)
    weight2 = jnp.linspace(0.25, 2.0, C2, dtype=jnp.float32)
    loss2 = jax.block_until_ready(
        label_smoothing_cross_entropy(outputs2, targets2, weight2,
                                      smoothing_value=0.1, reduction="mean"))
    ref2 = _reference(outputs2, targets2, weight2, smoothing_value=0.1)
    assert np.allclose(np.asarray(loss2), np.asarray(ref2),
                       rtol=1e-4, atol=1e-5), (loss2, ref2)

    print("KERNEL_OK")
</pallas_src>

<mosaic_0001>
module attributes {stable_mosaic.version = 11 : i64} {
  func.func @_ls_kernel_partials(%arg0: i32, %arg1: memref<8x128xf32, #tpu.memory_space<vmem>>, %arg2: memref<8x1xi32, #tpu.memory_space<vmem>>, %arg3: memref<8x1xf32, #tpu.memory_space<vmem>>, %arg4: memref<1x8x128xf32, #tpu.memory_space<vmem>>) attributes {dimension_semantics = [#tpu.dimension_semantics<parallel>], iteration_bounds = array<i64: 3>, scalar_prefetch = 0 : i64, scratch_operands = 0 : i64, tpu.core_type = #tpu.core_type<tc>, window_params = [{transform_indices = @transform_0, window_bounds = array<i64: 8, 128>}, {transform_indices = @transform_1, window_bounds = array<i64: 8, 1>}, {transform_indices = @transform_2, window_bounds = array<i64: 8, 1>}, {transform_indices = @transform_3, window_bounds = array<i64: 1, 8, 128>}]} {
    %c0 = arith.constant 0 : index
    %c0_0 = arith.constant 0 : index
    %0 = vector.load %arg1[%c0, %c0_0] : memref<8x128xf32, #tpu.memory_space<vmem>>, vector<8x128xf32>
    %c0_1 = arith.constant 0 : index
    %c0_2 = arith.constant 0 : index
    %1 = vector.load %arg2[%c0_1, %c0_2] : memref<8x1xi32, #tpu.memory_space<vmem>>, vector<8x1xi32>
    %c0_3 = arith.constant 0 : index
    %c0_4 = arith.constant 0 : index
    %2 = vector.load %arg3[%c0_3, %c0_4] : memref<8x1xf32, #tpu.memory_space<vmem>>, vector<8x1xf32>
    %cst = arith.constant dense<0xFF800000> : vector<8xf32>
    %3 = vector.multi_reduction <maximumf>, %0, %cst [1] : vector<8x128xf32> to vector<8xf32>
    %4 = vector.shape_cast %3 : vector<8xf32> to vector<8x1xf32>
    %5 = vector.broadcast %4 : vector<8x1xf32> to vector<8x128xf32>
    %6 = arith.subf %0, %5 : vector<8x128xf32>
    %7 = math.exp %6 : vector<8x128xf32>
    %cst_5 = arith.constant dense<0.000000e+00> : vector<8xf32>
    %8 = vector.multi_reduction <add>, %7, %cst_5 [1] : vector<8x128xf32> to vector<8xf32>
    %9 = vector.shape_cast %8 : vector<8xf32> to vector<8x1xf32>
    %10 = math.log %9 : vector<8x1xf32>
    %11 = arith.addf %10, %4 : vector<8x1xf32>
    %cst_6 = arith.constant 1.280000e+02 : f32
    %12 = vector.broadcast %cst_6 : f32 to vector<8x1xf32>
    %13 = arith.mulf %12, %11 : vector<8x1xf32>
    %cst_7 = arith.constant dense<0.000000e+00> : vector<8xf32>
    %14 = vector.multi_reduction <add>, %0, %cst_7 [1] : vector<8x128xf32> to vector<8xf32>
    %15 = vector.shape_cast %14 : vector<8xf32> to vector<8x1xf32>
    %16 = arith.subf %13, %15 : vector<8x1xf32>
    %17 = tpu.iota {dimensions = array<i32: 1>} : vector<8x128xi32>
    %18 = vector.broadcast %1 : vector<8x1xi32> to vector<8x128xi32>
    %19 = arith.cmpi eq, %17, %18 : vector<8x128xi32>
    %cst_8 = arith.constant 0.000000e+00 : f32
    %20 = vector.broadcast %cst_8 : f32 to vector<8x128xf32>
    %21 = arith.select %19, %0, %20 : vector<8x128xi1>, vector<8x128xf32>
    %cst_9 = arith.constant dense<0.000000e+00> : vector<8xf32>
    %22 = vector.multi_reduction <add>, %21, %cst_9 [1] : vector<8x128xf32> to vector<8xf32>
    %23 = vector.shape_cast %22 : vector<8xf32> to vector<8x1xf32>
    %24 = arith.subf %11, %23 : vector<8x1xf32>
    %25 = arith.mulf %2, %24 : vector<8x1xf32>
    %c8_i32 = arith.constant 8 : i32
    %26 = arith.muli %arg0, %c8_i32 : i32
    %27 = tpu.iota {dimensions = array<i32: 0>} : vector<8x1xi32>
    %28 = vector.broadcast %26 : i32 to vector<8x1xi32>
    %29 = arith.addi %28, %27 : vector<8x1xi32>
    %c20_i32 = arith.constant 20 : i32
    %30 = vector.broadcast %c20_i32 : i32 to vector<8x1xi32>
    %31 = arith.cmpi slt, %29, %30 : vector<8x1xi32>
    %cst_10 = arith.constant 0.000000e+00 : f32
    %32 = vector.broadcast %cst_10 : f32 to vector<8x1xf32>
    %33 = arith.select %31, %16, %32 : vector<8x1xi1>, vector<8x1xf32>
    %34 = vector.shape_cast %33 : vector<8x1xf32> to vector<1x8x1xf32>
    %cst_11 = arith.constant dense<0.000000e+00> : vector<1xf32>
    %35 = vector.multi_reduction <add>, %34, %cst_11 [1, 2] : vector<1x8x1xf32> to vector<1xf32>
    %36 = vector.shape_cast %35 : vector<1xf32> to vector<1x1x1xf32>
    %37 = vector.extract %36[0, 0, 0] : f32 from vector<1x1x1xf32>
    %cst_12 = arith.constant 0.000000e+00 : f32
    %38 = vector.broadcast %cst_12 : f32 to vector<8x1xf32>
    %39 = arith.select %31, %25, %38 : vector<8x1xi1>, vector<8x1xf32>
    %40 = vector.shape_cast %39 : vector<8x1xf32> to vector<1x8x1xf32>
    %cst_13 = arith.constant dense<0.000000e+00> : vector<1xf32>
    %41 = vector.multi_reduction <add>, %40, %cst_13 [1, 2] : vector<1x8x1xf32> to vector<1xf32>
    %42 = vector.shape_cast %41 : vector<1xf32> to vector<1x1x1xf32>
    %43 = vector.extract %42[0, 0, 0] : f32 from vector<1x1x1xf32>
    %cst_14 = arith.constant 0.000000e+00 : f32
    %44 = vector.broadcast %cst_14 : f32 to vector<8x1xf32>
    %45 = arith.select %31, %2, %44 : vector<8x1xi1>, vector<8x1xf32>
    %46 = vector.shape_cast %45 : vector<8x1xf32> to vector<1x8x1xf32>
    %cst_15 = arith.constant dense<0.000000e+00> : vector<1xf32>
    %47 = vector.multi_reduction <add>, %46, %cst_15 [1, 2] : vector<1x8x1xf32> to vector<1xf32>
    %48 = vector.shape_cast %47 : vector<1xf32> to vector<1x1x1xf32>
    %49 = vector.extract %48[0, 0, 0] : f32 from vector<1x1x1xf32>
    %50 = tpu.iota {dimensions = array<i32: 0>} : vector<8x128xi32>
    %51 = tpu.iota {dimensions = array<i32: 1>} : vector<8x128xi32>
    %c0_i32 = arith.constant 0 : i32
    %52 = vector.broadcast %c0_i32 : i32 to vector<8x128xi32>
    %53 = arith.cmpi eq, %50, %52 : vector<8x128xi32>
    %c0_i32_16 = arith.constant 0 : i32
    %54 = vector.broadcast %c0_i32_16 : i32 to vector<8x128xi32>
    %55 = arith.cmpi eq, %51, %54 : vector<8x128xi32>
    %56 = arith.andi %53, %55 : vector<8x128xi1>
    %c1_i32 = arith.constant 1 : i32
    %57 = vector.broadcast %c1_i32 : i32 to vector<8x128xi32>
    %58 = arith.cmpi eq, %51, %57 : vector<8x128xi32>
    %59 = arith.andi %53, %58 : vector<8x128xi1>
    %c2_i32 = arith.constant 2 : i32
    %60 = vector.broadcast %c2_i32 : i32 to vector<8x128xi32>
    %61 = arith.cmpi eq, %51, %60 : vector<8x128xi32>
    %62 = arith.andi %53, %61 : vector<8x128xi1>
    %cst_17 = arith.constant 0.000000e+00 : f32
    %63 = vector.broadcast %49 : f32 to vector<8x128xf32>
    %64 = vector.broadcast %cst_17 : f32 to vector<8x128xf32>
    %65 = arith.select %62, %63, %64 : vector<8x128xi1>, vector<8x128xf32>
    %66 = vector.broadcast %43 : f32 to vector<8x128xf32>
    %67 = arith.select %59, %66, %65 : vector<8x128xi1>, vector<8x128xf32>
    %68 = vector.broadcast %37 : f32 to vector<8x128xf32>
    %69 = arith.select %56, %68, %67 : vector<8x128xi1>, vector<8x128xf32>
    %c0_18 = arith.constant 0 : index
    %c0_19 = arith.constant 0 : index
    %c0_20 = arith.constant 0 : index
    %70 = vector.load %arg4[%c0_18, %c0_19, %c0_20] : memref<1x8x128xf32, #tpu.memory_space<vmem>>, vector<1x8x128xf32>
    %71 = vector.shape_cast %70 : vector<1x8x128xf32> to vector<8x128xf32>
    %72 = vector.shape_cast %69 : vector<8x128xf32> to vector<1x8x128xf32>
    tpu.vector_store %arg4[%c0_18, %c0_19, %c0_20], %72 {strides = array<i32>} : memref<1x8x128xf32, #tpu.memory_space<vmem>>, vector<1x8x128xf32>,
    return
  }
  func.func @transform_0(%arg0: i32) -> (i32, i32) {
    %c0_i32 = arith.constant 0 : i32
    %c0_i32_0 = arith.constant 0 : i32
    return %arg0, %c0_i32 : i32, i32
  }
  func.func @transform_1(%arg0: i32) -> (i32, i32) {
    %c0_i32 = arith.constant 0 : i32
    %c0_i32_0 = arith.constant 0 : i32
    return %arg0, %c0_i32 : i32, i32
  }
  func.func @transform_2(%arg0: i32) -> (i32, i32) {
    %c0_i32 = arith.constant 0 : i32
    %c0_i32_0 = arith.constant 0 : i32
    return %arg0, %c0_i32 : i32, i32
  }
  func.func @transform_3(%arg0: i32) -> (i32, i32, i32) {
    %c0_i32 = arith.constant 0 : i32
    %c0_i32_0 = arith.constant 0 : i32
    %c0_i32_1 = arith.constant 0 : i32
    return %arg0, %c0_i32, %c0_i32_0 : i32, i32, i32
  }
}

</mosaic_0001>

<llo_original>
// kernel: tpu_custom_call.1
$region0: #{tpu_custom_call.1}
  #allocation0 [shape = 'u32[]', space=smem, size = 0x4, offset = 0x4, fixed_abs, tag = 'smem constant byte address 0x4 - core index']
  #allocation1 [shape = 'u32[144,128]{1,0:T(1,128)}', space=vmem, size = 0x12000, scoped, tag = 'internal scratch']
  %s0 = inlined_call_operand.vmem [shape: f32[20,128], index: 0, kind: input, shape index: {}]
  %s1 = inlined_call_operand.vmem [shape: s32[20,1], index: 1, kind: input, shape index: {}]
  %s2 = inlined_call_operand.vmem [shape: f32[20,1], index: 2, kind: input, shape index: {}]
  %s3 = inlined_call_operand.hbm [shape: f32[3,8,128], index: 3, kind: output, shape index: {}]
  %s4 = sld [smem:[#allocation0]]
  $region45: #{tpu_custom_call.1} parent=0
    _
  %s6 = ssub.s32 1, %s4
  %s7 = scalar_select 0, %s6, %s4
  $region1: #{tpu_custom_call.1} parent=0
    #allocation2 [shape = 'u8[8192]{0}', space=vmem, size = 0x2000, scoped, tag = 'output window, operand 0']
    #allocation3 [shape = 's32[2]{0}', space=sflag, size = 0x8, scoped, tag = 'scoped memory for tpu_custom_call.1']
    %8 = vsyncpa [#allocation3], 0
    %s9 = scalar_lea.sflag [#allocation3], 1
    %10 = vsyncpa %s9, 0
    loop: start=0, step=1, limit=5
    $region2: #{tpu_custom_call.1} parent=1 // loop_pre_header
      _
    $region3: #{tpu_custom_call.1} parent=1 // loop_header
      %s12 = sphi 0, %s16
      %p13 = scmp.ge.s32.totalorder %s12, 5
      %s22 = sphi 0, %s24
      %s25 = sphi 0, %s22
      %s26 = sphi 0, %s25
      %s42 = sphi 0, %s26
      %s48 = sphi 0, %s50
      %s51 = sphi 0, %s48
      %s52 = sphi 0, %s51
      %s68 = sphi 0, %s52
      %s74 = sphi 0, %s76
      %s77 = sphi 0, %s74
      %s78 = sphi 0, %s77
      %s94 = sphi 0, %s78
      %s100 = sphi 0, %s102
      %s103 = sphi 0, %s100
      %s104 = sphi 0, %s103
      %s120 = sphi 0, %s104
    $region4: #{tpu_custom_call.1} parent=1 // loop_header_branch
      %15 = sbr.rel (%p13) target = $region8
    $region5: #{tpu_custom_call.1} parent=1 // loop_body
      %s17 = ssub.s32 %s12, 1
      %s18 = ssub.s32 %s12, 2
      %s19 = sadd.s32 %s12, 1
      %s20 = ssub.s32 %s12, %s19
      %p21 = scmp.eq.s32.totalorder %s20, 0
      %s23 = sadd.s32 %s22, 1
      %s24 = scalar_select %p21, %s22, %s23
      %p27 = pneg %p21
      %p28 = scmp.eq.s32.totalorder %s12, 2
      %p29 = por %p27, %p28
      %p30 = scmp.ne.s32.totalorder %s22, %s25
      %p31 = scmp.eq.s32.totalorder %s12, 0
      %p32 = por %p30, %p31
      %p33 = scmp.ne.s32.totalorder %s22, %s25
      %p34 = scmp.eq.s32.totalorder %s17, 2
      %p35 = por %p33, %p34
      %p36 = scmp.ne.s32.totalorder %s25, %s26
      %p37 = scmp.eq.s32.totalorder %s17, 0
      %p38 = por %p36, %p37
      %p39 = scmp.ne.s32.totalorder %s25, %s26
      %p40 = scmp.eq.s32.totalorder %s18, 2
      %p41 = por %p39, %p40
      %p43 = scmp.ne.s32.totalorder %s26, %s42
      %p44 = scmp.eq.s32.totalorder %s18, 0
      %p45 = por %p43, %p44
      %s46 = ssub.s32 %s12, %s19
      %p47 = scmp.eq.s32.totalorder %s46, 0
      %s49 = sadd.s32 %s48, 1
      %s50 = scalar_select %p47, %s48, %s49
      %p53 = pneg %p47
      %p54 = scmp.eq.s32.totalorder %s12, 2
      %p55 = por %p53, %p54
      %p56 = scmp.ne.s32.totalorder %s48, %s51
      %p57 = scmp.eq.s32.totalorder %s12, 0
      %p58 = por %p56, %p57
      %p59 = scmp.ne.s32.totalorder %s48, %s51
      %p60 = scmp.eq.s32.totalorder %s17, 2
      %p61 = por %p59, %p60
      %p62 = scmp.ne.s32.totalorder %s51, %s52
      %p63 = scmp.eq.s32.totalorder %s17, 0
      %p64 = por %p62, %p63
      %p65 = scmp.ne.s32.totalorder %s51, %s52
      %p66 = scmp.eq.s32.totalorder %s18, 2
      %p67 = por %p65, %p66
      %p69 = scmp.ne.s32.totalorder %s52, %s68
      %p70 = scmp.eq.s32.totalorder %s18, 0
      %p71 = por %p69, %p70
      %s72 = ssub.s32 %s12, %s19
      %p73 = scmp.eq.s32.totalorder %s72, 0
      %s75 = sadd.s32 %s74, 1
      %s76 = scalar_select %p73, %s74, %s75
      %p79 = pneg %p73
      %p80 = scmp.eq.s32.totalorder %s12, 2
      %p81 = por %p79, %p80
      %p82 = scmp.ne.s32.totalorder %s74, %s77
      %p83 = scmp.eq.s32.totalorder %s12, 0
      %p84 = por %p82, %p83
      %p85 = scmp.ne.s32.totalorder %s74, %s77
      %p86 = scmp.eq.s32.totalorder %s17, 2
      %p87 = por %p85, %p86
      %p88 = scmp.ne.s32.totalorder %s77, %s78
      %p89 = scmp.eq.s32.totalorder %s17, 0
      %p90 = por %p88, %p89
      %p91 = scmp.ne.s32.totalorder %s77, %s78
      %p92 = scmp.eq.s32.totalorder %s18, 2
      %p93 = por %p91, %p92
      %p95 = scmp.ne.s32.totalorder %s78, %s94
      %p96 = scmp.eq.s32.totalorder %s18, 0
      %p97 = por %p95, %p96
      %s98 = ssub.s32 %s12, %s19
      %p99 = scmp.eq.s32.totalorder %s98, 0
      %s101 = sadd.s32 %s100, 1
      %s102 = scalar_select %p99, %s100, %s101
      %p105 = pneg %p99
      %p106 = scmp.eq.s32.totalorder %s12, 2
      %p107 = por %p105, %p106
      %p108 = scmp.ne.s32.totalorder %s100, %s103
      %p109 = scmp.eq.s32.totalorder %s12, 0
      %p110 = por %p108, %p109
      %p111 = scmp.ne.s32.totalorder %s100, %s103
      %p112 = scmp.eq.s32.totalorder %s17, 2
      %p113 = por %p111, %p112
      %p114 = scmp.ne.s32.totalorder %s103, %s104
      %p115 = scmp.eq.s32.totalorder %s17, 0
      %p116 = por %p114, %p115
      %p117 = scmp.ne.s32.totalorder %s103, %s104
      %p118 = scmp.eq.s32.totalorder %s18, 2
      %p119 = por %p117, %p118
      %p121 = scmp.ne.s32.totalorder %s104, %s120
      %p122 = scmp.eq.s32.totalorder %s18, 0
      %p123 = por %p121, %p122
      %p124 = scmp.le.s32.totalorder 1, %s12
      %p125 = scmp.lt.s32.totalorder %s12, 4
      %p126 = pnand %p124, %p125
      %p127 = pneg %p126
      // Predicated region
      $region9: #{tpu_custom_call.1} parent=5 // pred_check
        _
      $region10: #{tpu_custom_call.1} parent=5 // pred_check_branch
        %129 = sbr.rel (%p126) target = $region12
      $region11: #{tpu_custom_call.1} parent=5 // pred_region
        %s130 = ssub.s32 %s12, 1
      $region12: #{tpu_custom_call.1} parent=5 // pred_fallthru
        _
      %p131 = scmp.lt.s32.totalorder %s12, 3
      // Predicated region
      $region13: #{tpu_custom_call.1} parent=5 // pred_check
        %p132 = pneg %p131
      $region14: #{tpu_custom_call.1} parent=5 // pred_check_branch
        %134 = sbr.rel (%p132) target = $region16
      $region15: #{tpu_custom_call.1} parent=5 // pred_region
        // Predicated region
        $region17: #{tpu_custom_call.1} parent=15 // pred_check
          %p135 = pneg %p32
        $region18: #{tpu_custom_call.1} parent=15 // pred_check_branch
          %137 = sbr.rel (%p135) target = $region20
        $region19: #{tpu_custom_call.1} parent=15 // pred_region
          %p138 = scmp.lt.s32.totalorder %s12, 2
          %s139 = scalar_select %p138, %s12, 2
          %s140 = smul.addr %s139, 8
          %s141 = scalar_lea.vmem %s0, %s140
        $region20: #{tpu_custom_call.1} parent=15 // pred_fallthru
          _
        // Predicated region
        $region21: #{tpu_custom_call.1} parent=15 // pred_check
          %p142 = pneg %p58
        $region22: #{tpu_custom_call.1} parent=15 // pred_check_branch
          %144 = sbr.rel (%p142) target = $region24
        $region23: #{tpu_custom_call.1} parent=15 // pred_region
          %p145 = scmp.lt.s32.totalorder %s12, 2
          %s146 = scalar_select %p145, %s12, 2
          %s147 = smul.addr %s146, 8
          %s148 = scalar_lea.vmem %s1, %s147
        $region24: #{tpu_custom_call.1} parent=15 // pred_fallthru
          _
        // Predicated region
        $region25: #{tpu_custom_call.1} parent=15 // pred_check
          %p149 = pneg %p84
        $region26: #{tpu_custom_call.1} parent=15 // pred_check_branch
          %151 = sbr.rel (%p149) target = $region28
        $region27: #{tpu_custom_call.1} parent=15 // pred_region
          %p152 = scmp.lt.s32.totalorder %s12, 2
          %s153 = scalar_select %p152, %s12, 2
          %s154 = smul.addr %s153, 8
          %s155 = scalar_lea.vmem %s2, %s154
        $region28: #{tpu_custom_call.1} parent=15 // pred_fallthru
          _
      $region16: #{tpu_custom_call.1} parent=5 // pred_fallthru
        _
      %p156 = scmp.le.s32.totalorder 1, %s12
      %p157 = scmp.lt.s32.totalorder %s12, 4
      %p158 = pnand %p156, %p157
      %p159 = pneg %p158
      // Predicated region
      $region29: #{tpu_custom_call.1} parent=5 // pred_check
        _
      $region30: #{tpu_custom_call.1} parent=5 // pred_check_branch
        %161 = sbr.rel (%p158) target = $region32
      $region31: #{tpu_custom_call.1} parent=5 // pred_region
        %s162 = ssub.s32 %s12, 1
        %p163 = scmp.lt.s32.totalorder %s17, 2
        %s164 = scalar_select %p163, %s17, 2
        %s165 = smul.addr %s164, 8
        %s166 = scalar_lea.vmem %s0, %s165
        %p167 = pneg %p38
        %p168 = pneg %p35
        %p169 = scmp.lt.s32.totalorder %s17, 2
        %s170 = scalar_select %p169, %s17, 2
        %s171 = smul.addr %s170, 8
        %s172 = scalar_lea.vmem %s1, %s171
        %p173 = pneg %p64
        %p174 = pneg %p61
        %p175 = scmp.lt.s32.totalorder %s17, 2
        %s176 = scalar_select %p175, %s17, 2
        %s177 = smul.addr %s176, 8
        %s178 = scalar_lea.vmem %s2, %s177
        %p179 = pneg %p90
        %p180 = pneg %p87
        %p181 = pneg %p116
        %p182 = pneg %p113
        %s183 = sand.u32 %s103, 1
        %s184 = scalar_lea.sflag [#allocation3], %s183
        %s185 = sand.u32 %s103, 1
        %s186 = smul.addr %s185, 8
        %s187 = scalar_lea.vmem [#allocation2], %s186
        %p188 = scmp.lt.s32.totalorder %s17, 2
        %s189 = scalar_select %p188, %s17, 2
        %s190 = smul.addr %s189, 8
        %s191 = scalar_lea.vmem %s0, %s190
        %p192 = scmp.lt.s32.totalorder %s17, 2
        %s193 = scalar_select %p192, %s17, 2
        %s194 = smul.addr %s193, 8
        %s195 = scalar_lea.vmem %s1, %s194
        %p196 = scmp.lt.s32.totalorder %s17, 2
        %s197 = scalar_select %p196, %s17, 2
        %s198 = smul.addr %s197, 8
        %s199 = scalar_lea.vmem %s2, %s198
        %v200 = vld [vmem:[%s191] sm:$0xff]
        %v201 = vld [vmem:[%s195] sm:$0xff]
        %v202 = vld [vmem:[%s199] sm:$0xff]
        %203 = vmax.xlane.f32.xlu0 %v200
        %v204 = vpop.xlane.xlu0 %203
        %v205 = vsub.f32 %v200, %v204
        %v206 = vmul.f32 %v205, 1.442695
        %v207 = vpow.pop %v206
        %208 = vadd.xlane.f32.xlu0 %v207
        %v209 = vpop.xlane.xlu0 %208
        %v210 = vlog2.pop %v209
        %v211 = vmul.f32 %v210, 0.6931472
        %v212 = vadd.f32 %v211, %v204
        %v213 = vmul.f32 %v212, 128.0
        %214 = vadd.xlane.f32.xlu0 %v200
        %v215 = vpop.xlane.xlu0 %214
        %v216 = vsub.f32 %v213, %v215
        %v217 = vlaneseq
        %v218 = vand.u32 %v217, 127
        %219 = vset.pattern.permute.xlu0 0
        %220 = vperm.xlu0 %219, %v201
        %v221 = vpop.permute.xlu0 %220
        %vm222 = vcmp.eq.s32.totalorder %v218, %v221
        %v223 = vsel %vm222, %v200, 0.0
        %224 = vadd.xlane.f32.xlu0 %v223
        %v225 = vpop.xlane.xlu0 %224
        %v226 = vsub.f32 %v212, %v225
        %v227 = vmul.f32 %v202, %v226
        %s228 = smul.u32 %s17, 8
        %v229 = vlaneseq
        %v230 = vshrl.u32 %v229, 7
        %v231 = vstv %s228
        %v232 = vadd.s32 %v231, %v230
        %vm233 = vcmp.lt.s32.totalorder %v232, 20
        %v234 = vsel %vm233, %v216, 0.0
        %vm235 = vcmask 7168
        %v236 = vsel %vm235, %v234, 0.0
        %237 = vadd.xlane.f32.xlu0 %v236
        %v238 = vpop.xlane.xlu0 %237
        %v239 = vrot.slane %v238, 4
        %v240 = vadd.f32 %v238, %v239
        %v241 = vrot.slane %v240, 2
        %v242 = vadd.f32 %v240, %v241
        %v243 = vrot.slane %v242, 1
        %v244 = vadd.f32 %v242, %v243
        %s245 = vtos %v244
        %v246 = vsel %vm233, %v227, 0.0
        %v247 = vsel %vm235, %v246, 0.0
        %248 = vadd.xlane.f32.xlu0 %v247
        %v249 = vpop.xlane.xlu0 %248
        %v250 = vrot.slane %v249, 4
        %v251 = vadd.f32 %v249, %v250
        %v252 = vrot.slane %v251, 2
        %v253 = vadd.f32 %v251, %v252
        %v254 = vrot.slane %v253, 1
        %v255 = vadd.f32 %v253, %v254
        %s256 = vtos %v255
        %v257 = vsel %vm233, %v202, 0.0
        %v258 = vsel %vm235, %v257, 0.0
        %259 = vadd.xlane.f32.xlu0 %v258
        %v260 = vpop.xlane.xlu0 %259
        %v261 = vrot.slane %v260, 4
        %v262 = vadd.f32 %v260, %v261
        %v263 = vrot.slane %v262, 2
        %v264 = vadd.f32 %v262, %v263
        %v265 = vrot.slane %v264, 1
        %v266 = vadd.f32 %v264, %v265
        %s267 = vtos %v266
        %vm268 = vcmp.eq.s32.totalorder %v230, 0
        %vm269 = vcmp.eq.s32.totalorder %v218, 0
        %vm270 = vmand %vm268, %vm269
        %vm271 = vcmp.eq.s32.totalorder %v218, 1
        %vm272 = vmand %vm268, %vm271
        %vm273 = vcmp.eq.s32.totalorder %v218, 2
        %vm274 = vmand %vm268, %vm273
        %v275 = vstv %s267
        %v276 = vsel %vm274, %v275, 0.0
        %v277 = vstv %s256
        %v278 = vsel %vm272, %v277, %v276
        %v279 = vstv %s245
        %v280 = vsel %vm270, %v279, %v278
        %281 = vst [vmem:[%s187] sm:$0xff] %v280
        %s282 = sand.u32 %s103, 1
        %s283 = scalar_lea.sflag [#allocation3], %s282
        %s284 = sand.u32 %s103, 1
        %s285 = smul.addr %s284, 8
        %s286 = scalar_lea.vmem [#allocation2], %s285
        // Predicated region
        $region33: #{tpu_custom_call.1} parent=31 // pred_check
          %p287 = pneg %p113
        $region34: #{tpu_custom_call.1} parent=31 // pred_check_branch
          %289 = sbr.rel (%p287) target = $region36
        $region35: #{tpu_custom_call.1} parent=31 // pred_region
          %s291 = ssub.s32 128, 128
          %292 = vsyncadd %s283, %s291
          %s293 = smul.addr %s17, 128
          %s294 = scalar_lea.hbm %s3, %s293
          %s296 = sshll.u32 %s286, 4
          %s297 = int_to_ptr.vmem [resolvable:$true] %s296
          %299 = dma.vmem_to_hbm [thread:$0]  %s297, 128, %s294, %s283
        $region36: #{tpu_custom_call.1} parent=31 // pred_fallthru
          _
      $region32: #{tpu_custom_call.1} parent=5 // pred_fallthru
        _
      %p300 = scmp.le.s32.totalorder 2, %s12
      // Predicated region
      $region37: #{tpu_custom_call.1} parent=5 // pred_check
        %p301 = pneg %p300
      $region38: #{tpu_custom_call.1} parent=5 // pred_check_branch
        %303 = sbr.rel (%p301) target = $region40
      $region39: #{tpu_custom_call.1} parent=5 // pred_region
        %s304 = ssub.s32 %s12, 2
        // Predicated region
        $region41: #{tpu_custom_call.1} parent=39 // pred_check
          %p305 = pneg %p119
        $region42: #{tpu_custom_call.1} parent=39 // pred_check_branch
          %307 = sbr.rel (%p305) target = $region44
        $region43: #{tpu_custom_call.1} parent=39 // pred_region
          %s308 = sand.u32 %s104, 1
          %s309 = scalar_lea.sflag [#allocation3], %s308
          %s310 = sand.u32 %s104, 1
          %s311 = smul.addr %s310, 8
          %s312 = scalar_lea.vmem [#allocation2], %s311
          %313 = dma.done %s309, 128
        $region44: #{tpu_custom_call.1} parent=39 // pred_fallthru
          _
      $region40: #{tpu_custom_call.1} parent=5 // pred_fallthru
        _
    $region6: #{tpu_custom_call.1} parent=1 // loop_footer
      %s16 = sadd.s32 1, %s12
    $region7: #{tpu_custom_call.1} parent=1 // loop_footer_branch
      %11 = sbr.rel target = $region3
    $region8: #{tpu_custom_call.1} parent=1 // loop_exit
      _
    %314 = vsyncpa [#allocation3], 1
    %s315 = scalar_lea.sflag [#allocation3], 1
    %316 = vsyncpa %s315, 1

</llo_original>
